<compile_context>
chip_gen: v6e
topology: v6e:2x2x1
jax: 0.10.0
libtpu: 0.0.40
codegen_flags: <defaults>
</compile_context>

<pallas_src>
import functools

import jax
import jax.numpy as jnp
from jax.experimental import pallas as pl
from jax.experimental.pallas import tpu as pltpu


def _round_up(x, m):
    return (x + m - 1) // m * m


def _dynamics_loss_kernel(seg_ref, dx_ref, dh_ref, zx_ref, zh_ref, acc_ref,
                          *, n_nodes, seg_pad, node_tile):
    c = pl.program_id(0)          # core (parallel) axis
    k = pl.program_id(1)          # node-stream (arbitrary) axis

    @pl.when(k == 0)
    def _():
        acc_ref[...] = jnp.zeros_like(acc_ref)

    # Global node-block index handled by this (core, step).  Clamped / padded
    # blocks are neutralized by the node-index mask below.
    blk = c * pl.num_programs(1) + k
    node0 = blk * node_tile
    node_idx = node0 + jax.lax.broadcasted_iota(jnp.int32, (node_tile, 1), 0)
    node_valid = node_idx < n_nodes                                # [TN, 1]

    # Per-node squared error summed over features (cast to f32 *before* the
    # subtraction so bf16 inputs keep full accuracy).
    dx = dx_ref[...].astype(jnp.float32)
    zx = zx_ref[...].astype(jnp.float32)
    dh = dh_ref[...].astype(jnp.float32)
    zh = zh_ref[...].astype(jnp.float32)
    err = (jnp.sum(jnp.square(dx - zx), axis=-1, keepdims=True)
           + jnp.sum(jnp.square(dh - zh), axis=-1, keepdims=True))  # [TN, 1]
    # Select (not multiply) so NaN/Inf garbage in overhang rows of the last
    # block cannot poison the MXU accumulation.
    err = jnp.where(node_valid, err, 0.0)
    cnt = node_valid.astype(jnp.float32)                            # [TN, 1]

    # Pack (err, count) into two lanes via broadcast+select (layout-safe).
    col = jax.lax.broadcasted_iota(jnp.int32, (node_tile, 2), 1)
    errcnt = jnp.where(col == 0, err, cnt)                          # [TN, 2]

    # One-hot segment membership for this node tile.  Garbage segment ids in
    # overhang rows can only select errcnt rows that are already zeroed.
    seg = seg_ref[...]                                              # [1, TN]
    seg_iota = jax.lax.broadcasted_iota(jnp.int32, (seg_pad, node_tile), 0)
    one_hot = (seg == seg_iota).astype(jnp.float32)                 # [S_pad,TN]

    # MXU segment reduction: [S_pad, TN] @ [TN, 2] -> per-segment
    # (sq-err sum, node count), accumulated in f32 across node steps.
    acc_ref[...] += jnp.dot(one_hot, errcnt,
                            preferred_element_type=jnp.float32)


def dynamics_loss(t, dx_t, dh_t, z_x, z_h, x, h, segment_ids, *,
                  n_segments, reduction='mean', node_tile=None):
    """Mirrors Continous_Diffusion_loss.forward; t, x, h are accepted for API
    parity but unused by the canonical L2 dynamics loss."""
    del t, x, h
    assert reduction in ('mean', 'sum')

    n_nodes = dx_t.shape[0]
    pos_dim = dx_t.shape[-1]
    hidden = dh_t.shape[-1]
    assert z_x.shape == dx_t.shape and z_h.shape == dh_t.shape
    seg_pad = max(8, _round_up(n_segments, 8))

    # Node tile: largest tile whose double-buffered input stream fits a
    # ~24 MiB VMEM budget (VMEM lane-pads each block's last dim to 128).
    per_node = 4 * 2 * (_round_up(pos_dim, 128) + _round_up(max(hidden, 1), 128))
    budget = 24 * 1024 * 1024
    tn = max(128, min(8192, (budget // (2 * per_node)) // 128 * 128))
    if node_tile is not None:
        tn = max(128, _round_up(min(node_tile, tn), 128))
    tn = min(tn, _round_up(n_nodes, 128))

    n_blocks = pl.cdiv(n_nodes, tn)
    num_cores = min(2, n_blocks)          # v7x megacore split; harmless on 1 TC
    k_steps = pl.cdiv(n_blocks, num_cores)
    max_blk = n_blocks - 1

    def node_map(c, k):
        return (jnp.minimum(c * k_steps + k, max_blk), 0)

    def seg_map(c, k):
        return (0, jnp.minimum(c * k_steps + k, max_blk))

    seg2d = segment_ids.astype(jnp.int32).reshape(1, n_nodes)

    kernel = functools.partial(_dynamics_loss_kernel,
                               n_nodes=n_nodes, seg_pad=seg_pad, node_tile=tn)

    parts = pl.pallas_call(
        kernel,
        out_shape=jax.ShapeDtypeStruct((num_cores, seg_pad, 2), jnp.float32),
        grid_spec=pltpu.PrefetchScalarGridSpec(
            num_scalar_prefetch=0,
            grid=(num_cores, k_steps),
            in_specs=[
                pl.BlockSpec((1, tn), seg_map),            # segment ids
                pl.BlockSpec((tn, pos_dim), node_map),     # dx_t
                pl.BlockSpec((tn, hidden), node_map),      # dh_t
                pl.BlockSpec((tn, pos_dim), node_map),     # z_x
                pl.BlockSpec((tn, hidden), node_map),      # z_h
            ],
            out_specs=pl.BlockSpec((None, seg_pad, 2), lambda c, k: (c, 0, 0)),
        ),
        compiler_params=pltpu.CompilerParams(
            dimension_semantics=("parallel", "arbitrary"),
            vmem_limit_bytes=48 * 1024 * 1024),
    )(seg2d, dx_t, dh_t, z_x, z_h)

    # Trivial finalize in JAX: combine per-core partials, per-segment mean,
    # then segment-level reduction.
    acc = jnp.sum(parts, axis=0)                         # [S_pad, 2]
    seg_err = acc[:n_segments, 0]
    seg_cnt = acc[:n_segments, 1]
    # Empty-but-valid segments contribute 0 (reference would produce NaN).
    per_seg = jnp.where(seg_cnt > 0.0, seg_err / jnp.maximum(seg_cnt, 1.0), 0.0)
    return jnp.mean(per_seg) if reduction == 'mean' else jnp.sum(per_seg)


def _reference_loss(dx_t, dh_t, z_x, z_h, segment_ids, n_segments, reduction):
    err = (jnp.sum((dx_t - z_x) ** 2, axis=-1)
           + jnp.sum((dh_t - z_h) ** 2, axis=-1)).astype(jnp.float32)
    seg_sum = jax.ops.segment_sum(err, segment_ids, num_segments=n_segments)
    seg_cnt = jax.ops.segment_sum(jnp.ones_like(err), segment_ids,
                                  num_segments=n_segments)
    per_seg = seg_sum / seg_cnt
    return jnp.mean(per_seg) if reduction == 'mean' else jnp.sum(per_seg)


def _run_case(key, n_nodes, hidden, segment_ids, n_segments, reduction,
              node_tile):
    ks = jax.random.split(key, 7)
    t = jax.random.uniform(ks[0], (n_nodes, 1), dtype=jnp.float32)
    dx_t = jax.random.normal(ks[1], (n_nodes, 3), dtype=jnp.float32)
    dh_t = jax.random.normal(ks[2], (n_nodes, hidden), dtype=jnp.float32)
    z_x = jax.random.normal(ks[3], (n_nodes, 3), dtype=jnp.float32)
    z_h = jax.random.normal(ks[4], (n_nodes, hidden), dtype=jnp.float32)
    x = jax.random.normal(ks[5], (n_nodes, 3), dtype=jnp.float32)
    h = jax.random.normal(ks[6], (n_nodes, hidden), dtype=jnp.float32)

    loss = dynamics_loss(t, dx_t, dh_t, z_x, z_h, x, h, segment_ids,
                         n_segments=n_segments, reduction=reduction,
                         node_tile=node_tile)
    loss = jax.block_until_ready(loss)
    ref = _reference_loss(dx_t, dh_t, z_x, z_h, segment_ids,
                          n_segments, reduction)
    assert jnp.allclose(loss, ref, rtol=1e-5, atol=1e-5), (loss, ref)


if __name__ == "__main__":
    key = jax.random.PRNGKey(0)
    k1, k2, k3 = jax.random.split(key, 3)

    # Case 1: docstring example — 3 molecules with 3, 4, 9 atoms
    # (single grid step, block overhangs the 16-row arrays).
    seg1 = jnp.array([0, 0, 0, 1, 1, 1, 1, 2, 2, 2, 2, 2, 2, 2, 2, 2],
                     dtype=jnp.int32)
    _run_case(k1, n_nodes=16, hidden=32, segment_ids=seg1, n_segments=3,
              reduction='mean', node_tile=None)
    _run_case(k2, n_nodes=16, hidden=32, segment_ids=seg1, n_segments=3,
              reduction='sum', node_tile=None)

    # Case 2: larger batch exercising the 2-core parallel split, a multi-step
    # node grid, a partial tail block and a clamped out-of-range block
    # (300 nodes, tile 128 -> 3 real blocks over a (2, 2) grid).
    n_nodes2, n_segments2 = 300, 7
    base = jnp.arange(n_segments2, dtype=jnp.int32)
    rest = jax.random.randint(k3, (n_nodes2 - n_segments2,), 0, n_segments2,
                              dtype=jnp.int32)
    seg2 = jnp.sort(jnp.concatenate([base, rest]))
    _run_case(k3, n_nodes=n_nodes2, hidden=64, segment_ids=seg2,
              n_segments=n_segments2, reduction='mean', node_tile=128)

    print("KERNEL_OK")
</pallas_src>

<mosaic_0001>
module attributes {stable_mosaic.version = 11 : i64} {
  func.func @_dynamics_loss_kernel(%arg0: i32, %arg1: i32, %arg2: memref<1x128xi32, #tpu.memory_space<vmem>>, %arg3: memref<128x3xf32, #tpu.memory_space<vmem>>, %arg4: memref<128x32xf32, #tpu.memory_space<vmem>>, %arg5: memref<128x3xf32, #tpu.memory_space<vmem>>, %arg6: memref<128x32xf32, #tpu.memory_space<vmem>>, %arg7: memref<1x8x2xf32, #tpu.memory_space<vmem>>) attributes {dimension_semantics = [#tpu.dimension_semantics<parallel>, #tpu.dimension_semantics<arbitrary>], iteration_bounds = array<i64: 1, 1>, scalar_prefetch = 0 : i64, scratch_operands = 0 : i64, tpu.core_type = #tpu.core_type<tc>, window_params = [{transform_indices = @transform_0, window_bounds = array<i64: 1, 128>}, {transform_indices = @transform_1, window_bounds = array<i64: 128, 3>}, {transform_indices = @transform_2, window_bounds = array<i64: 128, 32>}, {transform_indices = @transform_3, window_bounds = array<i64: 128, 3>}, {transform_indices = @transform_4, window_bounds = array<i64: 128, 32>}, {transform_indices = @transform_5, window_bounds = array<i64: 1, 8, 2>}]} {
    %c0_i32 = arith.constant 0 : i32
    %0 = arith.cmpi eq, %arg1, %c0_i32 : i32
    %1 = arith.extui %0 : i1 to i32
    %c0_i32_0 = arith.constant 0 : i32
    %2 = arith.cmpi ne, %1, %c0_i32_0 : i32
    scf.if %2 {
      %cst_20 = arith.constant 0.000000e+00 : f32
      %49 = vector.broadcast %cst_20 : f32 to vector<8x2xf32>
      %c0_21 = arith.constant 0 : index
      %c0_22 = arith.constant 0 : index
      %c0_23 = arith.constant 0 : index
      %50 = vector.load %arg7[%c0_21, %c0_22, %c0_23] : memref<1x8x2xf32, #tpu.memory_space<vmem>>, vector<1x8x2xf32>
      %51 = vector.shape_cast %50 : vector<1x8x2xf32> to vector<8x2xf32>
      %52 = vector.shape_cast %49 : vector<8x2xf32> to vector<1x8x2xf32>
      tpu.vector_store %arg7[%c0_21, %c0_22, %c0_23], %52 {strides = array<i32>} : memref<1x8x2xf32, #tpu.memory_space<vmem>>, vector<1x8x2xf32>,
    } else {
    }
    %c1_i32 = arith.constant 1 : i32
    %3 = arith.muli %arg0, %c1_i32 : i32
    %4 = arith.addi %3, %arg1 : i32
    %c128_i32 = arith.constant 128 : i32
    %5 = arith.muli %4, %c128_i32 : i32
    %6 = tpu.iota {dimensions = array<i32: 0>} : vector<128x1xi32>
    %7 = vector.broadcast %5 : i32 to vector<128x1xi32>
    %8 = arith.addi %7, %6 : vector<128x1xi32>
    %c16_i32 = arith.constant 16 : i32
    %9 = vector.broadcast %c16_i32 : i32 to vector<128x1xi32>
    %10 = arith.cmpi slt, %8, %9 : vector<128x1xi32>
    %c0 = arith.constant 0 : index
    %c0_1 = arith.constant 0 : index
    %11 = vector.load %arg3[%c0, %c0_1] : memref<128x3xf32, #tpu.memory_space<vmem>>, vector<128x3xf32>
    %c0_2 = arith.constant 0 : index
    %c0_3 = arith.constant 0 : index
    %12 = vector.load %arg5[%c0_2, %c0_3] : memref<128x3xf32, #tpu.memory_space<vmem>>, vector<128x3xf32>
    %c0_4 = arith.constant 0 : index
    %c0_5 = arith.constant 0 : index
    %13 = vector.load %arg4[%c0_4, %c0_5] : memref<128x32xf32, #tpu.memory_space<vmem>>, vector<128x32xf32>
    %c0_6 = arith.constant 0 : index
    %c0_7 = arith.constant 0 : index
    %14 = vector.load %arg6[%c0_6, %c0_7] : memref<128x32xf32, #tpu.memory_space<vmem>>, vector<128x32xf32>
    %15 = arith.subf %11, %12 : vector<128x3xf32>
    %16 = arith.mulf %15, %15 : vector<128x3xf32>
    %cst = arith.constant dense<0.000000e+00> : vector<128xf32>
    %17 = vector.multi_reduction <add>, %16, %cst [1] : vector<128x3xf32> to vector<128xf32>
    %18 = vector.shape_cast %17 : vector<128xf32> to vector<128x1xf32>
    %19 = arith.subf %13, %14 : vector<128x32xf32>
    %20 = arith.mulf %19, %19 : vector<128x32xf32>
    %cst_8 = arith.constant dense<0.000000e+00> : vector<128xf32>
    %21 = vector.multi_reduction <add>, %20, %cst_8 [1] : vector<128x32xf32> to vector<128xf32>
    %22 = vector.shape_cast %21 : vector<128xf32> to vector<128x1xf32>
    %23 = arith.addf %18, %22 : vector<128x1xf32>
    %cst_9 = arith.constant 0.000000e+00 : f32
    %24 = vector.broadcast %cst_9 : f32 to vector<128x1xf32>
    %25 = arith.select %10, %23, %24 : vector<128x1xi1>, vector<128x1xf32>
    %26 = arith.extui %10 : vector<128x1xi1> to vector<128x1xi32>
    %27 = arith.sitofp %26 : vector<128x1xi32> to vector<128x1xf32>
    %28 = tpu.iota {dimensions = array<i32: 1>} : vector<128x2xi32>
    %c0_i32_10 = arith.constant 0 : i32
    %29 = vector.broadcast %c0_i32_10 : i32 to vector<128x2xi32>
    %30 = arith.cmpi eq, %28, %29 : vector<128x2xi32>
    %31 = vector.shape_cast %25 : vector<128x1xf32> to vector<128x1xf32>
    %32 = vector.broadcast %31 : vector<128x1xf32> to vector<128x2xf32>
    %33 = vector.shape_cast %27 : vector<128x1xf32> to vector<128x1xf32>
    %34 = vector.broadcast %33 : vector<128x1xf32> to vector<128x2xf32>
    %35 = arith.select %30, %32, %34 : vector<128x2xi1>, vector<128x2xf32>
    %c0_11 = arith.constant 0 : index
    %c0_12 = arith.constant 0 : index
    %36 = vector.load %arg2[%c0_11, %c0_12] : memref<1x128xi32, #tpu.memory_space<vmem>>, vector<1x128xi32>
    %37 = tpu.iota {dimensions = array<i32: 0>} : vector<8x128xi32>
    %38 = vector.broadcast %36 : vector<1x128xi32> to vector<8x128xi32>
    %39 = arith.cmpi eq, %38, %37 : vector<8x128xi32>
    %40 = arith.extui %39 : vector<8x128xi1> to vector<8x128xi32>
    %41 = arith.sitofp %40 : vector<8x128xi32> to vector<8x128xf32>
    %c0_13 = arith.constant 0 : index
    %c0_14 = arith.constant 0 : index
    %c0_15 = arith.constant 0 : index
    %42 = vector.load %arg7[%c0_13, %c0_14, %c0_15] : memref<1x8x2xf32, #tpu.memory_space<vmem>>, vector<1x8x2xf32>
    %43 = vector.shape_cast %42 : vector<1x8x2xf32> to vector<8x2xf32>
    %cst_16 = arith.constant dense<0.000000e+00> : vector<8x2xf32>
    %44 = tpu.matmul %41, %35, %cst_16 {dimension_numbers = #tpu.dot_dimension_numbers<[1], [0], [0], [1], [0, 0, 1, 1], [], []>} : vector<8x128xf32>, vector<128x2xf32>, vector<8x2xf32> -> vector<8x2xf32>
    %45 = arith.addf %43, %44 : vector<8x2xf32>
    %c0_17 = arith.constant 0 : index
    %c0_18 = arith.constant 0 : index
    %c0_19 = arith.constant 0 : index
    %46 = vector.load %arg7[%c0_17, %c0_18, %c0_19] : memref<1x8x2xf32, #tpu.memory_space<vmem>>, vector<1x8x2xf32>
    %47 = vector.shape_cast %46 : vector<1x8x2xf32> to vector<8x2xf32>
    %48 = vector.shape_cast %45 : vector<8x2xf32> to vector<1x8x2xf32>
    tpu.vector_store %arg7[%c0_17, %c0_18, %c0_19], %48 {strides = array<i32>} : memref<1x8x2xf32, #tpu.memory_space<vmem>>, vector<1x8x2xf32>,
    return
  }
  func.func @transform_0(%arg0: i32, %arg1: i32) -> (i32, i32) {
    %c1_i32 = arith.constant 1 : i32
    %0 = arith.muli %arg0, %c1_i32 : i32
    %1 = arith.addi %0, %arg1 : i32
    %c0_i32 = arith.constant 0 : i32
    %2 = arith.minsi %1, %c0_i32 : i32
    %c0_i32_0 = arith.constant 0 : i32
    %c0_i32_1 = arith.constant 0 : i32
    return %c0_i32_0, %2 : i32, i32
  }
  func.func @transform_1(%arg0: i32, %arg1: i32) -> (i32, i32) {
    %c1_i32 = arith.constant 1 : i32
    %0 = arith.muli %arg0, %c1_i32 : i32
    %1 = arith.addi %0, %arg1 : i32
    %c0_i32 = arith.constant 0 : i32
    %2 = arith.minsi %1, %c0_i32 : i32
    %c0_i32_0 = arith.constant 0 : i32
    %c0_i32_1 = arith.constant 0 : i32
    return %2, %c0_i32_0 : i32, i32
  }
  func.func @transform_2(%arg0: i32, %arg1: i32) -> (i32, i32) {
    %c1_i32 = arith.constant 1 : i32
    %0 = arith.muli %arg0, %c1_i32 : i32
    %1 = arith.addi %0, %arg1 : i32
    %c0_i32 = arith.constant 0 : i32
    %2 = arith.minsi %1, %c0_i32 : i32
    %c0_i32_0 = arith.constant 0 : i32
    %c0_i32_1 = arith.constant 0 : i32
    return %2, %c0_i32_0 : i32, i32
  }
  func.func @transform_3(%arg0: i32, %arg1: i32) -> (i32, i32) {
    %c1_i32 = arith.constant 1 : i32
    %0 = arith.muli %arg0, %c1_i32 : i32
    %1 = arith.addi %0, %arg1 : i32
    %c0_i32 = arith.constant 0 : i32
    %2 = arith.minsi %1, %c0_i32 : i32
    %c0_i32_0 = arith.constant 0 : i32
    %c0_i32_1 = arith.constant 0 : i32
    return %2, %c0_i32_0 : i32, i32
  }
  func.func @transform_4(%arg0: i32, %arg1: i32) -> (i32, i32) {
    %c1_i32 = arith.constant 1 : i32
    %0 = arith.muli %arg0, %c1_i32 : i32
    %1 = arith.addi %0, %arg1 : i32
    %c0_i32 = arith.constant 0 : i32
    %2 = arith.minsi %1, %c0_i32 : i32
    %c0_i32_0 = arith.constant 0 : i32
    %c0_i32_1 = arith.constant 0 : i32
    return %2, %c0_i32_0 : i32, i32
  }
  func.func @transform_5(%arg0: i32, %arg1: i32) -> (i32, i32, i32) {
    %c0_i32 = arith.constant 0 : i32
    %c0_i32_0 = arith.constant 0 : i32
    %c0_i32_1 = arith.constant 0 : i32
    return %arg0, %c0_i32, %c0_i32_0 : i32, i32, i32
  }
}

</mosaic_0001>

<llo_original>
// kernel: tpu_custom_call.1
$region0: #{tpu_custom_call.1}
  #allocation0 [shape = 'u32[]', space=smem, size = 0x4, offset = 0x4, fixed_abs, tag = 'smem constant byte address 0x4 - core index']
  #allocation1 [shape = 'u32[144,128]{1,0:T(1,128)}', space=vmem, size = 0x12000, scoped, tag = 'internal scratch']
  %s0 = inlined_call_operand.vmem [shape: s32[1,16], index: 0, kind: input, shape index: {}]
  %s1 = inlined_call_operand.vmem [shape: f32[16,3], index: 1, kind: input, shape index: {}]
  %s2 = inlined_call_operand.vmem [shape: f32[16,32], index: 2, kind: input, shape index: {}]
  %s3 = inlined_call_operand.vmem [shape: f32[16,3], index: 3, kind: input, shape index: {}]
  %s4 = inlined_call_operand.vmem [shape: f32[16,32], index: 4, kind: input, shape index: {}]
  %s5 = inlined_call_operand.vmem [shape: f32[1,8,2], index: 5, kind: output, shape index: {}]
  %s6 = sld [smem:[#allocation0]]
  $region34: #{tpu_custom_call.1} parent=0
    _
  %s8 = ssub.s32 1, %s6
  %s9 = scalar_select 0, %s8, %s6
  // Predicated region
  $region2: #{tpu_custom_call.1} parent=0 // pred_check
    _
  $region3: #{tpu_custom_call.1} parent=0 // pred_check_branch
    %11 = sbr.rel (0) target = $region5
  $region4: #{tpu_custom_call.1} parent=0 // pred_region
    %s12 = sadd.s32 0, 0
    %p13 = scmp.lt.s32.totalorder %s12, 0
    %s14 = scalar_select %p13, %s12, 0
    %p15 = scmp.lt.s32.totalorder %s14, 0
    %s16 = scalar_select %p15, %s14, 0
    %s17 = scalar_lea.vmem %s0, %s16
    %s18 = sadd.s32 0, 0
    %p19 = scmp.lt.s32.totalorder %s18, 0
    %s20 = scalar_select %p19, %s18, 0
  $region5: #{tpu_custom_call.1} parent=0 // pred_fallthru
    _
  // Predicated region
  $region6: #{tpu_custom_call.1} parent=0 // pred_check
    _
  $region7: #{tpu_custom_call.1} parent=0 // pred_check_branch
    %22 = sbr.rel (0) target = $region9
  $region8: #{tpu_custom_call.1} parent=0 // pred_region
    %s23 = sadd.s32 0, 0
    %p24 = scmp.lt.s32.totalorder %s23, 0
    %s25 = scalar_select %p24, %s23, 0
    %s26 = smul.u32 16, %s25
    %s27 = ssub.s32 2, %s26
    %s28 = smul.u32 128, %s27
    %p29 = scmp.lt.s32.totalorder %s26, 1
    %s30 = scalar_select %p29, %s26, 1
    %s31 = smul.addr %s30, 8
    %s32 = scalar_lea.vmem %s1, %s31
    %s33 = sadd.s32 0, 0
    %p34 = scmp.lt.s32.totalorder %s33, 0
    %s35 = scalar_select %p34, %s33, 0
    %s36 = smul.u32 16, %s35
    %s37 = ssub.s32 2, %s36
    %s38 = smul.u32 128, %s37
  $region9: #{tpu_custom_call.1} parent=0 // pred_fallthru
    _
  // Predicated region
  $region10: #{tpu_custom_call.1} parent=0 // pred_check
    _
  $region11: #{tpu_custom_call.1} parent=0 // pred_check_branch
    %40 = sbr.rel (0) target = $region13
  $region12: #{tpu_custom_call.1} parent=0 // pred_region
    %s41 = sadd.s32 0, 0
    %p42 = scmp.lt.s32.totalorder %s41, 0
    %s43 = scalar_select %p42, %s41, 0
    %s44 = smul.u32 16, %s43
    %s45 = ssub.s32 2, %s44
    %s46 = smul.u32 128, %s45
    %p47 = scmp.lt.s32.totalorder %s44, 1
    %s48 = scalar_select %p47, %s44, 1
    %s49 = smul.addr %s48, 8
    %s50 = scalar_lea.vmem %s2, %s49
    %s51 = sadd.s32 0, 0
    %p52 = scmp.lt.s32.totalorder %s51, 0
    %s53 = scalar_select %p52, %s51, 0
    %s54 = smul.u32 16, %s53
    %s55 = ssub.s32 2, %s54
    %s56 = smul.u32 128, %s55
  $region13: #{tpu_custom_call.1} parent=0 // pred_fallthru
    _
  // Predicated region
  $region14: #{tpu_custom_call.1} parent=0 // pred_check
    _
  $region15: #{tpu_custom_call.1} parent=0 // pred_check_branch
    %58 = sbr.rel (0) target = $region17
  $region16: #{tpu_custom_call.1} parent=0 // pred_region
    %s59 = sadd.s32 0, 0
    %p60 = scmp.lt.s32.totalorder %s59, 0
    %s61 = scalar_select %p60, %s59, 0
    %s62 = smul.u32 16, %s61
    %s63 = ssub.s32 2, %s62
    %s64 = smul.u32 128, %s63
    %p65 = scmp.lt.s32.totalorder %s62, 1
    %s66 = scalar_select %p65, %s62, 1
    %s67 = smul.addr %s66, 8
    %s68 = scalar_lea.vmem %s3, %s67
    %s69 = sadd.s32 0, 0
    %p70 = scmp.lt.s32.totalorder %s69, 0
    %s71 = scalar_select %p70, %s69, 0
    %s72 = smul.u32 16, %s71
    %s73 = ssub.s32 2, %s72
    %s74 = smul.u32 128, %s73
  $region17: #{tpu_custom_call.1} parent=0 // pred_fallthru
    _
  // Predicated region
  $region18: #{tpu_custom_call.1} parent=0 // pred_check
    _
  $region19: #{tpu_custom_call.1} parent=0 // pred_check_branch
    %76 = sbr.rel (0) target = $region21
  $region20: #{tpu_custom_call.1} parent=0 // pred_region
    %s77 = sadd.s32 0, 0
    %p78 = scmp.lt.s32.totalorder %s77, 0
    %s79 = scalar_select %p78, %s77, 0
    %s80 = smul.u32 16, %s79
    %s81 = ssub.s32 2, %s80
    %s82 = smul.u32 128, %s81
    %p83 = scmp.lt.s32.totalorder %s80, 1
    %s84 = scalar_select %p83, %s80, 1
    %s85 = smul.addr %s84, 8
    %s86 = scalar_lea.vmem %s4, %s85
    %s87 = sadd.s32 0, 0
    %p88 = scmp.lt.s32.totalorder %s87, 0
    %s89 = scalar_select %p88, %s87, 0
    %s90 = smul.u32 16, %s89
    %s91 = ssub.s32 2, %s90
    %s92 = smul.u32 128, %s91
  $region21: #{tpu_custom_call.1} parent=0 // pred_fallthru
    _
  %s93 = sadd.s32 0, 0
  %p94 = scmp.lt.s32.totalorder %s93, 0
  %s95 = scalar_select %p94, %s93, 0
  %p96 = scmp.lt.s32.totalorder %s95, 0
  %s97 = scalar_select %p96, %s95, 0
  %s98 = scalar_lea.vmem %s0, %s97
  %s99 = sadd.s32 0, 0
  %p100 = scmp.lt.s32.totalorder %s99, 0
  %s101 = scalar_select %p100, %s99, 0
  %s102 = smul.u32 16, %s101
  %s103 = ssub.s32 2, %s102
  %s104 = smul.u32 128, %s103
  %p105 = scmp.lt.s32.totalorder %s102, 1
  %s106 = scalar_select %p105, %s102, 1
  %s107 = smul.addr %s106, 8
  %s108 = scalar_lea.vmem %s1, %s107
  %s109 = sadd.s32 0, 0
  %p110 = scmp.lt.s32.totalorder %s109, 0
  %s111 = scalar_select %p110, %s109, 0
  %s112 = smul.u32 16, %s111
  %s113 = ssub.s32 2, %s112
  %s114 = smul.u32 128, %s113
  %p115 = scmp.lt.s32.totalorder %s112, 1
  %s116 = scalar_select %p115, %s112, 1
  %s117 = smul.addr %s116, 8
  %s118 = scalar_lea.vmem %s2, %s117
  %s119 = sadd.s32 0, 0
  %p120 = scmp.lt.s32.totalorder %s119, 0
  %s121 = scalar_select %p120, %s119, 0
  %s122 = smul.u32 16, %s121
  %s123 = ssub.s32 2, %s122
  %s124 = smul.u32 128, %s123
  %p125 = scmp.lt.s32.totalorder %s122, 1
  %s126 = scalar_select %p125, %s122, 1
  %s127 = smul.addr %s126, 8
  %s128 = scalar_lea.vmem %s3, %s127
  %s129 = sadd.s32 0, 0
  %p130 = scmp.lt.s32.totalorder %s129, 0
  %s131 = scalar_select %p130, %s129, 0
  %s132 = smul.u32 16, %s131
  %s133 = ssub.s32 2, %s132
  %s134 = smul.u32 128, %s133
  %p135 = scmp.lt.s32.totalorder %s132, 1
  %s136 = scalar_select %p135, %s132, 1
  %s137 = smul.addr %s136, 8
  %s138 = scalar_lea.vmem %s4, %s137
  %s139 = sadd.s32 0, 0
  %p140 = scmp.lt.s32.totalorder %s139, 0
  %s141 = scalar_select %p140, %s139, 0
  %p142 = scmp.lt.s32.totalorder %s141, 0
  %s143 = scalar_select %p142, %s141, 0
  %s144 = scalar_lea.vmem %s0, %s143
  %s145 = sadd.s32 0, 0
  %p146 = scmp.lt.s32.totalorder %s145, 0
  %s147 = scalar_select %p146, %s145, 0
  %s148 = sadd.s32 0, 0
  %p149 = scmp.lt.s32.totalorder %s148, 0
  %s150 = scalar_select %p149, %s148, 0
  %s151 = smul.u32 16, %s150
  %s152 = ssub.s32 2, %s151
  %s153 = smul.u32 128, %s152
  %p154 = scmp.lt.s32.totalorder %s151, 1
  %s155 = scalar_select %p154, %s151, 1
  %s156 = smul.addr %s155, 8
  %s157 = scalar_lea.vmem %s1, %s156
  %s158 = sadd.s32 0, 0
  %p159 = scmp.lt.s32.totalorder %s158, 0
  %s160 = scalar_select %p159, %s158, 0
  %s161 = smul.u32 16, %s160
  %s162 = ssub.s32 2, %s161
  %s163 = smul.u32 128, %s162
  %s164 = sadd.s32 0, 0
  %p165 = scmp.lt.s32.totalorder %s164, 0
  %s166 = scalar_select %p165, %s164, 0
  %s167 = smul.u32 16, %s166
  %s168 = ssub.s32 2, %s167
  %s169 = smul.u32 128, %s168
  %p170 = scmp.lt.s32.totalorder %s167, 1
  %s171 = scalar_select %p170, %s167, 1
  %s172 = smul.addr %s171, 8
  %s173 = scalar_lea.vmem %s2, %s172
  %s174 = sadd.s32 0, 0
  %p175 = scmp.lt.s32.totalorder %s174, 0
  %s176 = scalar_select %p175, %s174, 0
  %s177 = smul.u32 16, %s176
  %s178 = ssub.s32 2, %s177
  %s179 = smul.u32 128, %s178
  %s180 = sadd.s32 0, 0
  %p181 = scmp.lt.s32.totalorder %s180, 0
  %s182 = scalar_select %p181, %s180, 0
  %s183 = smul.u32 16, %s182
  %s184 = ssub.s32 2, %s183
  %s185 = smul.u32 128, %s184
  %p186 = scmp.lt.s32.totalorder %s183, 1
  %s187 = scalar_select %p186, %s183, 1
  %s188 = smul.addr %s187, 8
  %s189 = scalar_lea.vmem %s3, %s188
  %s190 = sadd.s32 0, 0
  %p191 = scmp.lt.s32.totalorder %s190, 0
  %s192 = scalar_select %p191, %s190, 0
  %s193 = smul.u32 16, %s192
  %s194 = ssub.s32 2, %s193
  %s195 = smul.u32 128, %s194
  %s196 = sadd.s32 0, 0
  %p197 = scmp.lt.s32.totalorder %s196, 0
  %s198 = scalar_select %p197, %s196, 0
  %s199 = smul.u32 16, %s198
  %s200 = ssub.s32 2, %s199
  %s201 = smul.u32 128, %s200
  %p202 = scmp.lt.s32.totalorder %s199, 1
  %s203 = scalar_select %p202, %s199, 1
  %s204 = smul.addr %s203, 8
  %s205 = scalar_lea.vmem %s4, %s204
  %s206 = sadd.s32 0, 0
  %p207 = scmp.lt.s32.totalorder %s206, 0
  %s208 = scalar_select %p207, %s206, 0
  %s209 = smul.u32 16, %s208
  %s210 = ssub.s32 2, %s209
  %s211 = smul.u32 128, %s210
  %p212 = scmp.eq.s32.totalorder 0, 0
  // Predicated region
  $region22: #{tpu_custom_call.1} parent=0 // pred_check
    %p213 = pneg %p212
  $region23: #{tpu_custom_call.1} parent=0 // pred_check_branch
    %215 = sbr.rel (%p213) target = $region25
  $region24: #{tpu_custom_call.1} parent=0 // pred_region
    %vm216 = vcmask 15360
    %217 = vst.msk [vmem:[%s5] sm:$0xff] %vm216, 0.0
  $region25: #{tpu_custom_call.1} parent=0 // pred_fallthru
    _
  %s218 = sadd.s32 0, 0
  %s219 = smul.u32 %s218, 128
  %v220 = vlaneseq
  %v221 = vshrl.u32 %v220, 7
  %v222 = vadd.s32 %v221, 8
  %v223 = vadd.s32 %v221, 16
  %v224 = vadd.s32 %v221, 24
  %v225 = vadd.s32 %v221, 32
  %v226 = vadd.s32 %v221, 40
  %v227 = vadd.s32 %v221, 48
  %v228 = vadd.s32 %v221, 56
  %v229 = vadd.s32 %v221, 64
  %v230 = vadd.s32 %v221, 72
  %v231 = vadd.s32 %v221, 80
  %v232 = vadd.s32 %v221, 88
  %v233 = vadd.s32 %v221, 96
  %v234 = vadd.s32 %v221, 104
  %v235 = vadd.s32 %v221, 112
  %v236 = vadd.s32 %v221, 120
  %v237 = vstv %s219
  %v238 = vadd.s32 %v237, %v221
  %v239 = vadd.s32 %v237, %v222
  %v240 = vadd.s32 %v237, %v223
  %v241 = vadd.s32 %v237, %v224
  %v242 = vadd.s32 %v237, %v225
  %v243 = vadd.s32 %v237, %v226
  %v244 = vadd.s32 %v237, %v227
  %v245 = vadd.s32 %v237, %v228
  %v246 = vadd.s32 %v237, %v229
  %v247 = vadd.s32 %v237, %v230
  %v248 = vadd.s32 %v237, %v231
  %v249 = vadd.s32 %v237, %v232
  %v250 = vadd.s32 %v237, %v233
  %v251 = vadd.s32 %v237, %v234
  %v252 = vadd.s32 %v237, %v235
  %v253 = vadd.s32 %v237, %v236
  %vm254 = vcmp.lt.s32.totalorder %v238, 16
  %vm255 = vcmp.lt.s32.totalorder %v239, 16
  %vm256 = vcmp.lt.s32.totalorder %v240, 16
  %vm257 = vcmp.lt.s32.totalorder %v241, 16
  %vm258 = vcmp.lt.s32.totalorder %v242, 16
  %vm259 = vcmp.lt.s32.totalorder %v243, 16
  %vm260 = vcmp.lt.s32.totalorder %v244, 16
  %vm261 = vcmp.lt.s32.totalorder %v245, 16
  %vm262 = vcmp.lt.s32.totalorder %v246, 16
  %vm263 = vcmp.lt.s32.totalorder %v247, 16
  %vm264 = vcmp.lt.s32.totalorder %v248, 16
  %vm265 = vcmp.lt.s32.totalorder %v249, 16
  %vm266 = vcmp.lt.s32.totalorder %v250, 16
  %vm267 = vcmp.lt.s32.totalorder %v251, 16
  %vm268 = vcmp.lt.s32.totalorder %v252, 16
  %vm269 = vcmp.lt.s32.totalorder %v253, 16
  %v270 = vld [vmem:[%s157] sm:$0xff]
  %v271 = vld [vmem:[%s157 + $0x8] sm:$0xff]
  %v272 = vld [vmem:[%s157 + $0x10] sm:$0xff]
  %v273 = vld [vmem:[%s157 + $0x18] sm:$0xff]
  %v274 = vld [vmem:[%s157 + $0x20] sm:$0xff]
  %v275 = vld [vmem:[%s157 + $0x28] sm:$0xff]
  %v276 = vld [vmem:[%s157 + $0x30] sm:$0xff]
  %v277 = vld [vmem:[%s157 + $0x38] sm:$0xff]
  %v278 = vld [vmem:[%s157 + $0x40] sm:$0xff]
  %v279 = vld [vmem:[%s157 + $0x48] sm:$0xff]
  %v280 = vld [vmem:[%s157 + $0x50] sm:$0xff]
  %v281 = vld [vmem:[%s157 + $0x58] sm:$0xff]
  %v282 = vld [vmem:[%s157 + $0x60] sm:$0xff]
  %v283 = vld [vmem:[%s157 + $0x68] sm:$0xff]
  %v284 = vld [vmem:[%s157 + $0x70] sm:$0xff]
  %v285 = vld [vmem:[%s157 + $0x78] sm:$0xff]
  %v286 = vld [vmem:[%s189] sm:$0xff]
  %v287 = vld [vmem:[%s189 + $0x8] sm:$0xff]
  %v288 = vld [vmem:[%s189 + $0x10] sm:$0xff]
  %v289 = vld [vmem:[%s189 + $0x18] sm:$0xff]
  %v290 = vld [vmem:[%s189 + $0x20] sm:$0xff]
  %v291 = vld [vmem:[%s189 + $0x28] sm:$0xff]
  %v292 = vld [vmem:[%s189 + $0x30] sm:$0xff]
  %v293 = vld [vmem:[%s189 + $0x38] sm:$0xff]
  %v294 = vld [vmem:[%s189 + $0x40] sm:$0xff]
  %v295 = vld [vmem:[%s189 + $0x48] sm:$0xff]
  %v296 = vld [vmem:[%s189 + $0x50] sm:$0xff]
  %v297 = vld [vmem:[%s189 + $0x58] sm:$0xff]
  %v298 = vld [vmem:[%s189 + $0x60] sm:$0xff]
  %v299 = vld [vmem:[%s189 + $0x68] sm:$0xff]
  %v300 = vld [vmem:[%s189 + $0x70] sm:$0xff]
  %v301 = vld [vmem:[%s189 + $0x78] sm:$0xff]
  %v302 = vld [vmem:[%s173] sm:$0xff]
  %v303 = vld [vmem:[%s173 + $0x8] sm:$0xff]
  %v304 = vld [vmem:[%s173 + $0x10] sm:$0xff]
  %v305 = vld [vmem:[%s173 + $0x18] sm:$0xff]
  %v306 = vld [vmem:[%s173 + $0x20] sm:$0xff]
  %v307 = vld [vmem:[%s173 + $0x28] sm:$0xff]
  %v308 = vld [vmem:[%s173 + $0x30] sm:$0xff]
  %v309 = vld [vmem:[%s173 + $0x38] sm:$0xff]
  %v310 = vld [vmem:[%s173 + $0x40] sm:$0xff]
  %v311 = vld [vmem:[%s173 + $0x48] sm:$0xff]
  %v312 = vld [vmem:[%s173 + $0x50] sm:$0xff]
  %v313 = vld [vmem:[%s173 + $0x58] sm:$0xff]
  %v314 = vld [vmem:[%s173 + $0x60] sm:$0xff]
  %v315 = vld [vmem:[%s173 + $0x68] sm:$0xff]
  %v316 = vld [vmem:[%s173 + $0x70] sm:$0xff]
  %v317 = vld [vmem:[%s173 + $0x78] sm:$0xff]
  %v318 = vld [vmem:[%s205] sm:$0xff]
  %v319 = vld [vmem:[%s205 + $0x8] sm:$0xff]
  %v320 = vld [vmem:[%s205 + $0x10] sm:$0xff]
  %v321 = vld [vmem:[%s205 + $0x18] sm:$0xff]
  %v322 = vld [vmem:[%s205 + $0x20] sm:$0xff]
  %v323 = vld [vmem:[%s205 + $0x28] sm:$0xff]
  %v324 = vld [vmem:[%s205 + $0x30] sm:$0xff]
  %v325 = vld [vmem:[%s205 + $0x38] sm:$0xff]
  %v326 = vld [vmem:[%s205 + $0x40] sm:$0xff]
  %v327 = vld [vmem:[%s205 + $0x48] sm:$0xff]
  %v328 = vld [vmem:[%s205 + $0x50] sm:$0xff]
  %v329 = vld [vmem:[%s205 + $0x58] sm:$0xff]
  %v330 = vld [vmem:[%s205 + $0x60] sm:$0xff]
  %v331 = vld [vmem:[%s205 + $0x68] sm:$0xff]
  %v332 = vld [vmem:[%s205 + $0x70] sm:$0xff]
  %v333 = vld [vmem:[%s205 + $0x78] sm:$0xff]
  %v334 = vsub.f32 %v270, %v286
  %v335 = vsub.f32 %v271, %v287
  %v336 = vsub.f32 %v272, %v288
  %v337 = vsub.f32 %v273, %v289
  %v338 = vsub.f32 %v274, %v290
  %v339 = vsub.f32 %v275, %v291
  %v340 = vsub.f32 %v276, %v292
  %v341 = vsub.f32 %v277, %v293
  %v342 = vsub.f32 %v278, %v294
  %v343 = vsub.f32 %v279, %v295
  %v344 = vsub.f32 %v280, %v296
  %v345 = vsub.f32 %v281, %v297
  %v346 = vsub.f32 %v282, %v298
  %v347 = vsub.f32 %v283, %v299
  %v348 = vsub.f32 %v284, %v300
  %v349 = vsub.f32 %v285, %v301
  %v350 = vmul.f32 %v334, %v334
  %v351 = vmul.f32 %v335, %v335
  %v352 = vmul.f32 %v336, %v336
  %v353 = vmul.f32 %v337, %v337
  %v354 = vmul.f32 %v338, %v338
  %v355 = vmul.f32 %v339, %v339
  %v356 = vmul.f32 %v340, %v340
  %v357 = vmul.f32 %v341, %v341
  %v358 = vmul.f32 %v342, %v342
  %v359 = vmul.f32 %v343, %v343
  %v360 = vmul.f32 %v344, %v344
  %v361 = vmul.f32 %v345, %v345
  %v362 = vmul.f32 %v346, %v346
  %v363 = vmul.f32 %v347, %v347
  %v364 = vmul.f32 %v348, %v348
  %v365 = vmul.f32 %v349, %v349
  %vm366 = vcmask 23552
  %v367 = vsel %vm366, %v350, 0.0
  %368 = vadd.xlane.f32.xlu0 %v367
  %v369 = vpop.xlane.xlu0 %368
  %v370 = vsel %vm366, %v351, 0.0
  %371 = vadd.xlane.f32.xlu0 %v370
  %v372 = vpop.xlane.xlu0 %371
  %v373 = vsel %vm366, %v352, 0.0
  %374 = vadd.xlane.f32.xlu0 %v373
  %v375 = vpop.xlane.xlu0 %374
  %v376 = vsel %vm366, %v353, 0.0
  %377 = vadd.xlane.f32.xlu0 %v376
  %v378 = vpop.xlane.xlu0 %377
  %v379 = vsel %vm366, %v354, 0.0
  %380 = vadd.xlane.f32.xlu0 %v379
  %v381 = vpop.xlane.xlu0 %380
  %v382 = vsel %vm366, %v355, 0.0
  %383 = vadd.xlane.f32.xlu0 %v382
  %v384 = vpop.xlane.xlu0 %383
  %v385 = vsel %vm366, %v356, 0.0
  %386 = vadd.xlane.f32.xlu0 %v385
  %v387 = vpop.xlane.xlu0 %386
  %v388 = vsel %vm366, %v357, 0.0
  %389 = vadd.xlane.f32.xlu0 %v388
  %v390 = vpop.xlane.xlu0 %389
  %v391 = vsel %vm366, %v358, 0.0
  %392 = vadd.xlane.f32.xlu0 %v391
  %v393 = vpop.xlane.xlu0 %392
  %v394 = vsel %vm366, %v359, 0.0
  %395 = vadd.xlane.f32.xlu0 %v394
  %v396 = vpop.xlane.xlu0 %395
  %v397 = vsel %vm366, %v360, 0.0
  %398 = vadd.xlane.f32.xlu0 %v397
  %v399 = vpop.xlane.xlu0 %398
  %v400 = vsel %vm366, %v361, 0.0
  %401 = vadd.xlane.f32.xlu0 %v400
  %v402 = vpop.xlane.xlu0 %401
  %v403 = vsel %vm366, %v362, 0.0
  %404 = vadd.xlane.f32.xlu0 %v403
  %v405 = vpop.xlane.xlu0 %404
  %v406 = vsel %vm366, %v363, 0.0
  %407 = vadd.xlane.f32.xlu0 %v406
  %v408 = vpop.xlane.xlu0 %407
  %v409 = vsel %vm366, %v364, 0.0
  %410 = vadd.xlane.f32.xlu0 %v409
  %v411 = vpop.xlane.xlu0 %410
  %v412 = vsel %vm366, %v365, 0.0
  %413 = vadd.xlane.f32.xlu0 %v412
  %v414 = vpop.xlane.xlu0 %413
  %v415 = vsub.f32 %v302, %v318
  %v416 = vsub.f32 %v303, %v319
  %v417 = vsub.f32 %v304, %v320
  %v418 = vsub.f32 %v305, %v321
  %v419 = vsub.f32 %v306, %v322
  %v420 = vsub.f32 %v307, %v323
  %v421 = vsub.f32 %v308, %v324
  %v422 = vsub.f32 %v309, %v325
  %v423 = vsub.f32 %v310, %v326
  %v424 = vsub.f32 %v311, %v327
  %v425 = vsub.f32 %v312, %v328
  %v426 = vsub.f32 %v313, %v329
  %v427 = vsub.f32 %v314, %v330
  %v428 = vsub.f32 %v315, %v331
  %v429 = vsub.f32 %v316, %v332
  %v430 = vsub.f32 %v317, %v333
  %v431 = vmul.f32 %v415, %v415
  %v432 = vmul.f32 %v416, %v416
  %v433 = vmul.f32 %v417, %v417
  %v434 = vmul.f32 %v418, %v418
  %v435 = vmul.f32 %v419, %v419
  %v436 = vmul.f32 %v420, %v420
  %v437 = vmul.f32 %v421, %v421
  %v438 = vmul.f32 %v422, %v422
  %v439 = vmul.f32 %v423, %v423
  %v440 = vmul.f32 %v424, %v424
  %v441 = vmul.f32 %v425, %v425
  %v442 = vmul.f32 %v426, %v426
  %v443 = vmul.f32 %v427, %v427
  %v444 = vmul.f32 %v428, %v428
  %v445 = vmul.f32 %v429, %v429
  %v446 = vmul.f32 %v430, %v430
  %vm447 = vcmask 261120
  %v448 = vsel %vm447, %v431, 0.0
  %449 = vadd.xlane.f32.xlu0 %v448
  %v450 = vpop.xlane.xlu0 %449
  %v451 = vsel %vm447, %v432, 0.0
  %452 = vadd.xlane.f32.xlu0 %v451
  %v453 = vpop.xlane.xlu0 %452
  %v454 = vsel %vm447, %v433, 0.0
  %455 = vadd.xlane.f32.xlu0 %v454
  %v456 = vpop.xlane.xlu0 %455
  %v457 = vsel %vm447, %v434, 0.0
  %458 = vadd.xlane.f32.xlu0 %v457
  %v459 = vpop.xlane.xlu0 %458
  %v460 = vsel %vm447, %v435, 0.0
  %461 = vadd.xlane.f32.xlu0 %v460
  %v462 = vpop.xlane.xlu0 %461
  %v463 = vsel %vm447, %v436, 0.0
  %464 = vadd.xlane.f32.xlu0 %v463
  %v465 = vpop.xlane.xlu0 %464
  %v466 = vsel %vm447, %v437, 0.0
  %467 = vadd.xlane.f32.xlu0 %v466
  %v468 = vpop.xlane.xlu0 %467
  %v469 = vsel %vm447, %v438, 0.0
  %470 = vadd.xlane.f32.xlu0 %v469
  %v471 = vpop.xlane.xlu0 %470
  %v472 = vsel %vm447, %v439, 0.0
  %473 = vadd.xlane.f32.xlu0 %v472
  %v474 = vpop.xlane.xlu0 %473
  %v475 = vsel %vm447, %v440, 0.0
  %476 = vadd.xlane.f32.xlu0 %v475
  %v477 = vpop.xlane.xlu0 %476
  %v478 = vsel %vm447, %v441, 0.0
  %479 = vadd.xlane.f32.xlu0 %v478
  %v480 = vpop.xlane.xlu0 %479
  %v481 = vsel %vm447, %v442, 0.0
  %482 = vadd.xlane.f32.xlu0 %v481
  %v483 = vpop.xlane.xlu0 %482
  %v484 = vsel %vm447, %v443, 0.0
  %485 = vadd.xlane.f32.xlu0 %v484
  %v486 = vpop.xlane.xlu0 %485
  %v487 = vsel %vm447, %v444, 0.0
  %488 = vadd.xlane.f32.xlu0 %v487
  %v489 = vpop.xlane.xlu0 %488
  %v490 = vsel %vm447, %v445, 0.0
  %491 = vadd.xlane.f32.xlu0 %v490
  %v492 = vpop.xlane.xlu0 %491
  %v493 = vsel %vm447, %v446, 0.0
  %494 = vadd.xlane.f32.xlu0 %v493
  %v495 = vpop.xlane.xlu0 %494
  %v496 = vadd.f32 %v369, %v450
  %v497 = vadd.f32 %v372, %v453
  %v498 = vadd.f32 %v375, %v456
  %v499 = vadd.f32 %v378, %v459
  %v500 = vadd.f32 %v381, %v462
  %v501 = vadd.f32 %v384, %v465
  %v502 = vadd.f32 %v387, %v468
  %v503 = vadd.f32 %v390, %v471
  %v504 = vadd.f32 %v393, %v474
  %v505 = vadd.f32 %v396, %v477
  %v506 = vadd.f32 %v399, %v480
  %v507 = vadd.f32 %v402, %v483
  %v508 = vadd.f32 %v405, %v486
  %v509 = vadd.f32 %v408, %v489
  %v510 = vadd.f32 %v411, %v492
  %v511 = vadd.f32 %v414, %v495
  %v512 = vsel %vm254, %v496, 0.0
  %v513 = vsel %vm255, %v497, 0.0
  %v514 = vsel %vm256, %v498, 0.0
  %v515 = vsel %vm257, %v499, 0.0
  %v516 = vsel %vm258, %v500, 0.0
  %v517 = vsel %vm259, %v501, 0.0
  %v518 = vsel %vm260, %v502, 0.0
  %v519 = vsel %vm261, %v503, 0.0
  %v520 = vsel %vm262, %v504, 0.0
  %v521 = vsel %vm263, %v505, 0.0
  %v522 = vsel %vm264, %v506, 0.0
  %v523 = vsel %vm265, %v507, 0.0
  %v524 = vsel %vm266, %v508, 0.0
  %v525 = vsel %vm267, %v509, 0.0
  %v526 = vsel %vm268, %v510, 0.0
  %v527 = vsel %vm269, %v511, 0.0
  %v528 = vsel %vm254, 1, 0
  %v529 = vsel %vm255, 1, 0
  %v530 = vsel %vm256, 1, 0
  %v531 = vsel %vm257, 1, 0
  %v532 = vsel %vm258, 1, 0
  %v533 = vsel %vm259, 1, 0
  %v534 = vsel %vm260, 1, 0
  %v535 = vsel %vm261, 1, 0
  %v536 = vsel %vm262, 1, 0
  %v537 = vsel %vm263, 1, 0
  %v538 = vsel %vm264, 1, 0
  %v539 = vsel %vm265, 1, 0
  %v540 = vsel %vm266, 1, 0
  %v541 = vsel %vm267, 1, 0
  %v542 = vsel %vm268, 1, 0
  %v543 = vsel %vm269, 1, 0
  %v544 = vcvt.s32.f32 %v528
  %v545 = vcvt.s32.f32 %v529
  %v546 = vcvt.s32.f32 %v530
  %v547 = vcvt.s32.f32 %v531
  %v548 = vcvt.s32.f32 %v532
  %v549 = vcvt.s32.f32 %v533
  %v550 = vcvt.s32.f32 %v534
  %v551 = vcvt.s32.f32 %v535
  %v552 = vcvt.s32.f32 %v536
  %v553 = vcvt.s32.f32 %v537
  %v554 = vcvt.s32.f32 %v538
  %v555 = vcvt.s32.f32 %v539
  %v556 = vcvt.s32.f32 %v540
  %v557 = vcvt.s32.f32 %v541
  %v558 = vcvt.s32.f32 %v542
  %v559 = vcvt.s32.f32 %v543
  %v560 = vlaneseq
  %v561 = vand.u32 %v560, 127
  %vm562 = vcmp.eq.s32.totalorder %v561, 0
  %v563 = vsel %vm562, %v512, %v544
  %v564 = vsel %vm562, %v513, %v545
  %v565 = vsel %vm562, %v514, %v546
  %v566 = vsel %vm562, %v515, %v547
  %v567 = vsel %vm562, %v516, %v548
  %v568 = vsel %vm562, %v517, %v549
  %v569 = vsel %vm562, %v518, %v550
  %v570 = vsel %vm562, %v519, %v551
  %v571 = vsel %vm562, %v520, %v552
  %v572 = vsel %vm562, %v521, %v553
  %v573 = vsel %vm562, %v522, %v554
  %v574 = vsel %vm562, %v523, %v555
  %v575 = vsel %vm562, %v524, %v556
  %v576 = vsel %vm562, %v525, %v557
  %v577 = vsel %vm562, %v526, %v558
  %v578 = vsel %vm562, %v527, %v559
  %v579 = vld [vmem:[%s144] sm:$0x1]
  %v580 = vlaneseq
  %v581 = vshrl.u32 %v580, 7
  %v582 = vsub.s32 0, %v581
  %v583 = vrot.slane %v579, %v582
  %vm584 = vcmp.eq.s32.totalorder %v583, %v221
  %v585 = vsel %vm584, 1, 0
  %v586 = vcvt.s32.f32 %v585
  %v587 = vld [vmem:[%s5] sm:$0xff]
  %588 = vmatprep.subr.mxu0 0.0
  %589 = vmatpush1.msra.mxu0 %v578
  %590 = vmatprep.subr.mxu0 0.0
  %591 = vmatpush1.msra.mxu0 %v577
  %592 = vmatprep.subr.mxu0 0.0
  %593 = vmatpush1.msra.mxu0 %v576
  %594 = vmatprep.subr.mxu0 0.0
  %595 = vmatpush1.msra.mxu0 %v575
  %596 = vmatprep.subr.mxu0 0.0
  %597 = vmatpush1.msra.mxu0 %v574
  %598 = vmatprep.subr.mxu0 0.0
  %599 = vmatpush1.msra.mxu0 %v573
  %600 = vmatprep.subr.mxu0 0.0
  %601 = vmatpush1.msra.mxu0 %v572
  %602 = vmatprep.subr.mxu0 0.0
  %603 = vmatpush1.msra.mxu0 %v571
  %604 = vmatprep.subr.mxu0 0.0
  %605 = vmatpush1.msra.mxu0 %v570
  %606 = vmatprep.subr.mxu0 0.0
  %607 = vmatpush1.msra.mxu0 %v569
  %608 = vmatprep.subr.mxu0 0.0
  %609 = vmatpush1.msra.mxu0 %v568
  %610 = vmatprep.subr.mxu0 0.0
  %611 = vmatpush1.msra.mxu0 %v567
  %612 = vmatprep.subr.mxu0 0.0
  %613 = vmatpush1.msra.mxu0 %v566
  %614 = vmatprep.subr.mxu0 0.0
  %615 = vmatpush1.msra.mxu0 %v565
  %616 = vmatprep.subr.mxu0 0.0
  %617 = vmatpush1.msra.mxu0 %v564
  %618 = vmatprep.subr.mxu0 0.0
  %619 = vmatpush1.msra.mxu0 %v563
  %620 = vmatprep.subr.mxu0 0.0
  %621 = vmatpush2.msra.mxu0 0.0
  %622 = vmatprep.subr.mxu0 0.0
  %623 = vmatpush2.msra.mxu0 0.0
  %624 = vmatprep.subr.mxu0 0.0
  %625 = vmatpush2.msra.mxu0 0.0
  %626 = vmatprep.subr.mxu0 0.0
  %627 = vmatpush2.msra.mxu0 0.0
  %628 = vmatprep.subr.mxu0 0.0
  %629 = vmatpush2.msra.mxu0 0.0
  %630 = vmatprep.subr.mxu0 0.0
  %631 = vmatpush2.msra.mxu0 0.0
  %632 = vmatprep.subr.mxu0 0.0
  %633 = vmatpush2.msra.mxu0 0.0
  %634 = vmatprep.subr.mxu0 0.0
  %635 = vmatpush2.msra.mxu0 0.0
  %636 = vmatprep.subr.mxu0 0.0
  %637 = vmatpush2.msra.mxu0 0.0
  %638 = vmatprep.subr.mxu0 0.0
  %639 = vmatpush2.msra.mxu0 0.0
  %640 = vmatprep.subr.mxu0 0.0
  %641 = vmatpush2.msra.mxu0 0.0
  %642 = vmatprep.subr.mxu0 0.0
  %643 = vmatpush2.msra.mxu0 0.0
  %644 = vmatprep.subr.mxu0 0.0
  %645 = vmatpush2.msra.mxu0 0.0
  %646 = vmatprep.subr.mxu0 0.0
  %647 = vmatpush2.msra.mxu0 0.0
  %648 = vmatprep.subr.mxu0 0.0
  %649 = vmatpush2.msra.mxu0 0.0
  %650 = vmatprep.subr.mxu0 0.0
  %651 = vmatpush2.msra.mxu0 0.0
  %652 = vmatprep.mubr.f32.mxu0 0.0
  %653 = vmatmul.mubr.f32.gmra.mxu0 %v586
  %v654 = vpop.f32.mrf.mxu0
  %v655 = vadd.f32 0.0, %v654
  %v656 = vpop.f32.mrf.mxu0
  %657 = vdwg.mxu0
  %v658 = vadd.f32 %v587, %v655
  %vm659 = vcmask 15360
  %660 = vst.msk [vmem:[%s5] sm:$0xff] %vm659, %v658
  // Predicated region
  $region26: #{tpu_custom_call.1} parent=0 // pred_check
    _
  $region27: #{tpu_custom_call.1} parent=0 // pred_check_branch
    %662 = sbr.rel (0) target = $region29
  $region28: #{tpu_custom_call.1} parent=0 // pred_region
    _
  $region29: #{tpu_custom_call.1} parent=0 // pred_fallthru
    _
  // Predicated region
  $region30: #{tpu_custom_call.1} parent=0 // pred_check
    _
  $region31: #{tpu_custom_call.1} parent=0 // pred_check_branch
    %664 = sbr.rel (0) target = $region33
  $region32: #{tpu_custom_call.1} parent=0 // pred_region
    _
  $region33: #{tpu_custom_call.1} parent=0 // pred_fallthru
    _

</llo_original>
